<compile_context>
chip_gen: v7x
topology: tpu7x:2x2x1
jax: 0.10.0
libtpu: 0.0.40
codegen_flags: <defaults>
</compile_context>

<pallas_src>
import math
from functools import partial

import numpy as np
import jax
import jax.numpy as jnp
from jax.experimental import pallas as pl
from jax.experimental.pallas import tpu as pltpu


# ----------------------------------------------------------------------------
# sin-cos positional embeddings (deterministic, plain numpy glue)
# ----------------------------------------------------------------------------
def _get_1d_sincos(embed_dim, pos):
    omega = np.arange(embed_dim // 2, dtype=np.float64)
    omega /= embed_dim / 2.0
    omega = 1.0 / 10000 ** omega
    pos = pos.reshape(-1)
    out = np.einsum("m,d->md", pos, omega)
    return np.concatenate([np.sin(out), np.cos(out)], axis=1)


def get_2d_sincos_pos_embed(embed_dim, grid_size):
    gh = np.arange(grid_size, dtype=np.float64)
    gw = np.arange(grid_size, dtype=np.float64)
    gw, gh = np.meshgrid(gw, gh)
    emb_h = _get_1d_sincos(embed_dim // 2, gh)
    emb_w = _get_1d_sincos(embed_dim // 2, gw)
    return np.concatenate([emb_h, emb_w], axis=1)


def get_2d_sincos_pos_embed_xy(embed_dim, grid_h_size, grid_w_size):
    gh = np.arange(grid_h_size, dtype=np.float64)
    gw = np.arange(grid_w_size, dtype=np.float64)
    gw, gh = np.meshgrid(gw, gh)
    emb_h = _get_1d_sincos(embed_dim // 2, gh)
    emb_w = _get_1d_sincos(embed_dim // 2, gw)
    return np.concatenate([emb_h, emb_w], axis=1)


# ----------------------------------------------------------------------------
# in-kernel math helpers (traced inside Pallas kernels, all f32 elementwise)
# ----------------------------------------------------------------------------
def _layernorm(x, w, b, eps=1e-5):
    mu = jnp.mean(x, axis=-1, keepdims=True)
    var = jnp.mean((x - mu) ** 2, axis=-1, keepdims=True)
    return (x - mu) * jax.lax.rsqrt(var + eps) * w + b


def _erf_approx(x):
    # Abramowitz & Stegun 7.1.26, |err| < 1.5e-7; VPU/EUP ops only.
    a1, a2, a3, a4, a5 = 0.254829592, -0.284496736, 1.421413741, -1.453152027, 1.061405429
    p = 0.3275911
    s = jnp.where(x >= 0.0, 1.0, -1.0)
    ax = jnp.abs(x)
    t = 1.0 / (1.0 + p * ax)
    poly = ((((a5 * t + a4) * t + a3) * t + a2) * t + a1) * t
    return s * (1.0 - poly * jnp.exp(-ax * ax))


def _gelu_exact(x):
    # PyTorch nn.GELU default (erf form)
    return 0.5 * x * (1.0 + _erf_approx(x * 0.7071067811865476))


def _softmax(x):
    x = x - jnp.max(x, axis=-1, keepdims=True)
    e = jnp.exp(x)
    denom = jnp.sum(e, axis=-1, keepdims=True)
    return e * pl.reciprocal(denom, approx=True)   # EUP slot, keeps VALU free


# ----------------------------------------------------------------------------
# Pallas kernels
# ----------------------------------------------------------------------------
def _linear_kernel(x_ref, w_ref, b_ref, o_ref):
    acc = jnp.dot(x_ref[...].astype(jnp.bfloat16), w_ref[...],
                  preferred_element_type=jnp.float32)
    o_ref[...] = (acc + b_ref[...]).astype(o_ref.dtype)


def pallas_linear(x, w, b, *, block_m=256):
    """x:(M,Din) f32 @ w:(Din,Dout) bf16 + b:(1,Dout) f32 -> (M,Dout) f32.

    Tiled over M with a parallel grid axis so DMA/compute pipeline and, on
    v7x, both TensorCores are used.
    """
    M, Din = x.shape
    Dout = w.shape[1]
    bm = min(block_m, M)
    Mp = -(-M // bm) * bm
    xp = x if Mp == M else jnp.pad(x, ((0, Mp - M), (0, 0)))
    out = pl.pallas_call(
        _linear_kernel,
        out_shape=jax.ShapeDtypeStruct((Mp, Dout), jnp.float32),
        grid=(Mp // bm,),
        in_specs=[
            pl.BlockSpec((bm, Din), lambda i: (i, 0)),
            pl.BlockSpec((Din, Dout), lambda i: (0, 0)),
            pl.BlockSpec((1, Dout), lambda i: (0, 0)),
        ],
        out_specs=pl.BlockSpec((bm, Dout), lambda i: (i, 0)),
        compiler_params=pltpu.CompilerParams(dimension_semantics=("parallel",)),
    )(xp, w, b)
    return out if Mp == M else out[:M]


def _fused_blocks_kernel(x_ref, ln1w_ref, ln1b_ref, wq_ref, bq_ref, wk_ref, bk_ref,
                         wv_ref, bv_ref, wo_ref, bo_ref, ln2w_ref, ln2b_ref,
                         w1_ref, b1_ref, w2_ref, b2_ref, nw_ref, nb_ref,
                         o_ref, *, num_heads):
    """One (batch, layer) grid step of the full transformer stack.

    The token block for batch b lives in o_ref (resident across the depth axis);
    per-layer weights are streamed.  The final predictor_norm is fused into the
    last layer step.
    """
    layer = pl.program_id(1)
    last = pl.num_programs(1) - 1

    @pl.when(layer == 0)
    def _():                                   # load the activations once
        o_ref[0] = x_ref[0]

    x = o_ref[0]                               # (N, D) f32, resident in VMEM
    D = x.shape[-1]
    dh = D // num_heads
    scale = dh ** -0.5

    # ---- attention (pre-norm); per-head weights, proj fused into head loop ----
    h = _layernorm(x, ln1w_ref[0], ln1b_ref[0])
    h_b = h.astype(jnp.bfloat16)
    y = jnp.zeros_like(x)
    for hd in range(num_heads):                # static unroll over heads
        q = jnp.dot(h_b, wq_ref[0, hd], preferred_element_type=jnp.float32) + bq_ref[0, hd]
        k = jnp.dot(h_b, wk_ref[0, hd], preferred_element_type=jnp.float32) + bk_ref[0, hd]
        v = jnp.dot(h_b, wv_ref[0, hd], preferred_element_type=jnp.float32) + bv_ref[0, hd]
        s = jax.lax.dot_general(q.astype(jnp.bfloat16), k.astype(jnp.bfloat16),
                                (((1,), (1,)), ((), ())),
                                preferred_element_type=jnp.float32) * scale
        p = _softmax(s)
        ho = jnp.dot(p.astype(jnp.bfloat16), v.astype(jnp.bfloat16),
                     preferred_element_type=jnp.float32)
        # fused output projection: accumulate head_out @ Wo_head (no lane concat)
        y = y + jnp.dot(ho.astype(jnp.bfloat16), wo_ref[0, hd],
                        preferred_element_type=jnp.float32)
    x = x + y + bo_ref[0]

    # ---- MLP (pre-norm) ----
    h2 = _layernorm(x, ln2w_ref[0], ln2b_ref[0])
    m = jnp.dot(h2.astype(jnp.bfloat16), w1_ref[0],
                preferred_element_type=jnp.float32) + b1_ref[0]
    m = _gelu_exact(m)
    m = jnp.dot(m.astype(jnp.bfloat16), w2_ref[0],
                preferred_element_type=jnp.float32) + b2_ref[0]
    x = x + m

    @pl.when(layer < last)
    def _():
        o_ref[0] = x.astype(o_ref.dtype)

    @pl.when(layer == last)
    def _():                                   # fused final predictor_norm
        o_ref[0] = _layernorm(x, nw_ref[...], nb_ref[...]).astype(o_ref.dtype)


def fused_blocks(x, params, num_heads):
    """All transformer blocks + final LayerNorm in one pallas_call."""
    B, N, D = x.shape
    bp = params["blocks"]
    layer_params = [bp[k] for k in ("ln1_w", "ln1_b", "wq", "bq", "wk", "bk",
                                    "wv", "bv", "wo", "bo", "ln2_w", "ln2_b",
                                    "w1", "b1", "w2", "b2")]
    shared_params = [params["norm_w"], params["norm_b"]]
    depth = bp["ln1_w"].shape[0]

    def layer_spec(p):
        nd = p.ndim
        return pl.BlockSpec((1,) + p.shape[1:],
                            lambda b, l, _nd=nd: (l,) + (0,) * (_nd - 1))

    def shared_spec(p):
        nd = p.ndim
        return pl.BlockSpec(p.shape, lambda b, l, _nd=nd: (0,) * _nd)

    in_specs = ([pl.BlockSpec((1, N, D), lambda b, l: (b, 0, 0))]
                + [layer_spec(p) for p in layer_params]
                + [shared_spec(p) for p in shared_params])

    return pl.pallas_call(
        partial(_fused_blocks_kernel, num_heads=num_heads),
        out_shape=jax.ShapeDtypeStruct((B, N, D), x.dtype),
        grid=(B, depth),
        in_specs=in_specs,
        out_specs=pl.BlockSpec((1, N, D), lambda b, l: (b, 0, 0)),
        compiler_params=pltpu.CompilerParams(
            dimension_semantics=("parallel", "arbitrary")),
    )(x, *layer_params, *shared_params)


# ----------------------------------------------------------------------------
# parameter construction (deterministic, mirrors the torch __init__)
# ----------------------------------------------------------------------------
def init_params(key, *, embed_dim, pred_dim, depth, num_heads, mlp_ratio,
                grid_size, a_h, a_w, init_std=0.02, num_mask_tokens=2):
    D = pred_dim
    H = int(D * mlp_ratio)
    dh = D // num_heads
    keys = iter(jax.random.split(key, 16))
    bf16 = jnp.bfloat16

    def tn(shape):
        return (init_std * jax.random.truncated_normal(next(keys), -2.0, 2.0, shape)
                ).astype(jnp.float32)

    zeros = lambda s: jnp.zeros(s, jnp.float32)
    ones = lambda s: jnp.ones(s, jnp.float32)

    # _rescale_blocks: attn.proj and mlp.fc2 weights divided by sqrt(2*(l+1))
    r = jnp.asarray([1.0 / math.sqrt(2.0 * (l + 1)) for l in range(depth)], jnp.float32)

    params = {
        "embed_v_w": tn((embed_dim, D)).astype(bf16), "embed_v_b": zeros((1, D)),
        "embed_a_w": tn((embed_dim, D)).astype(bf16), "embed_a_b": zeros((1, D)),
        "proj_w": tn((D, embed_dim)).astype(bf16), "proj_b": zeros((1, embed_dim)),
        "norm_w": ones((1, D)), "norm_b": zeros((1, D)),
        # zero_init_mask_tokens=True
        "mask_tokens_v": zeros((num_mask_tokens, 1, 1, D)),
        "mask_tokens_a": zeros((num_mask_tokens, 1, 1, D)),
        "pos_v": jnp.asarray(get_2d_sincos_pos_embed(D, grid_size), jnp.float32)[None],
        "pos_a": jnp.asarray(get_2d_sincos_pos_embed_xy(D, a_h, a_w), jnp.float32)[None],
        "num_mask_tokens": num_mask_tokens,
        "num_heads": num_heads,
    }
    # block weights stacked with a leading depth axis; matmul weights bf16,
    # attention q/k/v/out stored per-head to avoid lane-misaligned slicing.
    params["blocks"] = {
        "ln1_w": ones((depth, 1, D)), "ln1_b": zeros((depth, 1, D)),
        "wq": tn((depth, num_heads, D, dh)).astype(bf16),
        "bq": zeros((depth, num_heads, 1, dh)),
        "wk": tn((depth, num_heads, D, dh)).astype(bf16),
        "bk": zeros((depth, num_heads, 1, dh)),
        "wv": tn((depth, num_heads, D, dh)).astype(bf16),
        "bv": zeros((depth, num_heads, 1, dh)),
        "wo": (tn((depth, num_heads, dh, D)) * r[:, None, None, None]).astype(bf16),
        "bo": zeros((depth, 1, D)),
        "ln2_w": ones((depth, 1, D)), "ln2_b": zeros((depth, 1, D)),
        "w1": tn((depth, D, H)).astype(bf16), "b1": zeros((depth, 1, H)),
        "w2": (tn((depth, H, D)) * r[:, None, None]).astype(bf16),
        "b2": zeros((depth, 1, D)),
    }
    return params


# ----------------------------------------------------------------------------
# forward pass (glue in plain JAX, hot path in Pallas)
# ----------------------------------------------------------------------------
def forward(params, ctxt, tgt, masks_ctxt, masks_tgt, mask_index=1):
    ctxt_v, ctxt_a = ctxt
    masks_ctxt_v, masks_ctxt_a = masks_ctxt
    masks_tgt_v, masks_tgt_a = masks_tgt
    del tgt  # mask-token path (use_mask_tokens=True): target tokens are unused

    B, Ncv, E = ctxt_v.shape
    _, Nca, _ = ctxt_a.shape
    D = params["norm_w"].shape[1]
    num_heads = params["num_heads"]

    # predictor_embed_{v,a}
    x_v = pallas_linear(ctxt_v.reshape(B * Ncv, E),
                        params["embed_v_w"], params["embed_v_b"]).reshape(B, Ncv, D)
    x_a = pallas_linear(ctxt_a.reshape(B * Nca, E),
                        params["embed_a_w"], params["embed_a_b"]).reshape(B, Nca, D)

    pos_v = jnp.broadcast_to(params["pos_v"], (B,) + params["pos_v"].shape[1:])
    pos_a = jnp.broadcast_to(params["pos_a"], (B,) + params["pos_a"].shape[1:])

    def gather(x, idx):  # apply_masks (single mask tensor per list)
        idx = jnp.broadcast_to(idx[..., None].astype(jnp.int32),
                               idx.shape + (x.shape[-1],))
        return jnp.take_along_axis(x, idx, axis=1)

    x_v = x_v + gather(pos_v, masks_ctxt_v)
    x_a = x_a + gather(pos_a, masks_ctxt_a)

    # mask tokens (zero-initialized) + target positional embeddings
    mi = mask_index % params["num_mask_tokens"]
    pred_v = jnp.broadcast_to(params["mask_tokens_v"][mi], (B, params["pos_v"].shape[1], D))
    pred_a = jnp.broadcast_to(params["mask_tokens_a"][mi], (B, params["pos_a"].shape[1], D))
    pred_v = gather(pred_v, masks_tgt_v) + gather(pos_v, masks_tgt_v)
    pred_a = gather(pred_a, masks_tgt_a) + gather(pos_a, masks_tgt_a)

    x_v = jnp.concatenate([x_v, pred_v], axis=1)
    x_a = jnp.concatenate([x_a, pred_a], axis=1)
    x = jnp.concatenate([x_v, x_a], axis=1)

    # (masks would be concatenated here, but the reference Block ignores them)
    # fused transformer stack + final predictor_norm, one pallas_call
    x = fused_blocks(x, params, num_heads)

    Nv_tot = x_v.shape[1]
    x1 = x[:, Ncv:Nv_tot]                 # predicted video tokens
    x2 = x[:, Nv_tot + Nca:]              # predicted audio tokens
    x = jnp.concatenate([x1, x2], axis=1)
    Bo, Nt, _ = x.shape
    x = pallas_linear(x.reshape(Bo * Nt, D),
                      params["proj_w"], params["proj_b"]).reshape(Bo, Nt, E)
    return x


# ----------------------------------------------------------------------------
if __name__ == "__main__":
    key = jax.random.PRNGKey(0)

    # small config consistent with the module's geometry
    B = 2
    embed_dim = 64
    pred_dim = 32
    depth = 2
    num_heads = 4
    mlp_ratio = 4.0
    img_size, patch_size = 64, 32
    a_size = (128, 192)                     # default a_size (matches pos-embed init)
    grid_size = img_size // patch_size      # 2 -> 4 video patches (num_frames//tubelet=1)
    num_patches_v = grid_size * grid_size
    a_h, a_w = a_size[0] // patch_size, a_size[1] // patch_size  # 4, 6 -> 24 audio patches
    num_patches_a = a_h * a_w

    Ncv, Ntv = 2, 2        # video context / target token counts
    Nca, Nta = 16, 8       # audio context / target token counts

    (k_param, k_cv, k_ca, k_tv, k_ta,
     k_mcv, k_mca, k_mtv, k_mta) = jax.random.split(key, 9)

    params = init_params(k_param, embed_dim=embed_dim, pred_dim=pred_dim, depth=depth,
                         num_heads=num_heads, mlp_ratio=mlp_ratio, grid_size=grid_size,
                         a_h=a_h, a_w=a_w)

    ctxt_v = jax.random.normal(k_cv, (B, Ncv, embed_dim), jnp.float32)
    ctxt_a = jax.random.normal(k_ca, (B, Nca, embed_dim), jnp.float32)
    tgt_v = jax.random.normal(k_tv, (B, num_patches_v, embed_dim), jnp.float32)  # unused
    tgt_a = jax.random.normal(k_ta, (B, num_patches_a, embed_dim), jnp.float32)  # unused

    def make_mask(k, n_total, n_keep):
        idx = jnp.stack([jax.random.permutation(kk, n_total)[:n_keep]
                         for kk in jax.random.split(k, B)])
        return jnp.sort(idx, axis=1).astype(jnp.int32)

    masks_ctxt_v = make_mask(k_mcv, num_patches_v, Ncv)
    masks_ctxt_a = make_mask(k_mca, num_patches_a, Nca)
    masks_tgt_v = make_mask(k_mtv, num_patches_v, Ntv)
    masks_tgt_a = make_mask(k_mta, num_patches_a, Nta)

    out = forward(params, (ctxt_v, ctxt_a), (tgt_v, tgt_a),
                  (masks_ctxt_v, masks_ctxt_a), (masks_tgt_v, masks_tgt_a),
                  mask_index=1)
    out = jax.block_until_ready(out)
    assert out.shape == (B, Ntv + Nta, embed_dim), out.shape
    assert bool(jnp.all(jnp.isfinite(out)))
    print("KERNEL_OK")
</pallas_src>

<mosaic_0001>
module attributes {stable_mosaic.version = 11 : i64} {
  func.func @_linear_kernel(%arg0: i32, %arg1: memref<4x64xf32, #tpu.memory_space<vmem>>, %arg2: memref<64x32xbf16, #tpu.memory_space<vmem>>, %arg3: memref<1x32xf32, #tpu.memory_space<vmem>>, %arg4: memref<4x32xf32, #tpu.memory_space<vmem>>) attributes {dimension_semantics = [#tpu.dimension_semantics<parallel>], iteration_bounds = array<i64: 1>, scalar_prefetch = 0 : i64, scratch_operands = 0 : i64, tpu.core_type = #tpu.core_type<tc>, window_params = [{transform_indices = @transform_0, window_bounds = array<i64: 4, 64>}, {pipeline_mode = #tpu.pipeline_mode<synchronous>, transform_indices = @transform_1, window_bounds = array<i64: 64, 32>}, {pipeline_mode = #tpu.pipeline_mode<synchronous>, transform_indices = @transform_2, window_bounds = array<i64: 1, 32>}, {transform_indices = @transform_3, window_bounds = array<i64: 4, 32>}]} {
    %c0 = arith.constant 0 : index
    %c0_0 = arith.constant 0 : index
    %0 = vector.load %arg1[%c0, %c0_0] : memref<4x64xf32, #tpu.memory_space<vmem>>, vector<4x64xf32>
    %1 = arith.truncf %0 : vector<4x64xf32> to vector<4x64xbf16>
    %c0_1 = arith.constant 0 : index
    %c0_2 = arith.constant 0 : index
    %2 = vector.load %arg2[%c0_1, %c0_2] : memref<64x32xbf16, #tpu.memory_space<vmem>>, vector<64x32xbf16>
    %cst = arith.constant dense<0.000000e+00> : vector<4x32xf32>
    %3 = tpu.matmul %1, %2, %cst {dimension_numbers = #tpu.dot_dimension_numbers<[1], [0], [0], [1], [0, 0, 1, 1], [], []>} : vector<4x64xbf16>, vector<64x32xbf16>, vector<4x32xf32> -> vector<4x32xf32>
    %c0_3 = arith.constant 0 : index
    %c0_4 = arith.constant 0 : index
    %4 = vector.load %arg3[%c0_3, %c0_4] : memref<1x32xf32, #tpu.memory_space<vmem>>, vector<1x32xf32>
    %5 = vector.broadcast %4 : vector<1x32xf32> to vector<4x32xf32>
    %6 = arith.addf %3, %5 : vector<4x32xf32>
    %c0_5 = arith.constant 0 : index
    %c0_6 = arith.constant 0 : index
    %7 = vector.load %arg4[%c0_5, %c0_6] : memref<4x32xf32, #tpu.memory_space<vmem>>, vector<4x32xf32>
    tpu.vector_store %arg4[%c0_5, %c0_6], %6 {strides = array<i32>} : memref<4x32xf32, #tpu.memory_space<vmem>>, vector<4x32xf32>,
    return
  }
  func.func @transform_0(%arg0: i32) -> (i32, i32) {
    %c0_i32 = arith.constant 0 : i32
    %c0_i32_0 = arith.constant 0 : i32
    return %arg0, %c0_i32 : i32, i32
  }
  func.func @transform_1(%arg0: i32) -> (i32, i32) {
    %c0_i32 = arith.constant 0 : i32
    %c0_i32_0 = arith.constant 0 : i32
    %c0_i32_1 = arith.constant 0 : i32
    return %c0_i32, %c0_i32_0 : i32, i32
  }
  func.func @transform_2(%arg0: i32) -> (i32, i32) {
    %c0_i32 = arith.constant 0 : i32
    %c0_i32_0 = arith.constant 0 : i32
    %c0_i32_1 = arith.constant 0 : i32
    return %c0_i32, %c0_i32_0 : i32, i32
  }
  func.func @transform_3(%arg0: i32) -> (i32, i32) {
    %c0_i32 = arith.constant 0 : i32
    %c0_i32_0 = arith.constant 0 : i32
    return %arg0, %c0_i32 : i32, i32
  }
}

</mosaic_0001>

<llo_original>
// kernel: tpu_custom_call.1
$region0: #{tpu_custom_call.1}
  #allocation0 [shape = 'u32[]', space=smem, size = 0x4, offset = 0x4, fixed_abs, tag = 'smem constant byte address 0x4 - core index']
  #allocation1 [shape = 'u32[144,128]{1,0:T(1,128)}', space=vmem, size = 0x12000, scoped, tag = 'internal scratch']
  %s0 = inlined_call_operand.vmem [shape: f32[4,64], index: 0, kind: input, shape index: {}]
  %s1 = inlined_call_operand.vmem [shape: bf16[64,32], index: 1, kind: input, shape index: {}]
  %s2 = inlined_call_operand.vmem [shape: f32[1,32], index: 2, kind: input, shape index: {}]
  %s3 = inlined_call_operand.hbm [shape: f32[4,32], index: 3, kind: output, shape index: {}]
  %s4 = sld [smem:[#allocation0]]
  $region22: #{tpu_custom_call.1} parent=0
    _
  %s6 = ssub.s32 1, %s4
  %s7 = scalar_select 0, %s6, %s4
  $region1: #{tpu_custom_call.1} parent=0
    #allocation2 [shape = 'u8[2048]{0}', space=vmem, size = 0x800, scoped, tag = 'output window, operand 0, single buffered']
    #allocation3 [shape = 's32[1]{0}', space=sflag, size = 0x4, scoped, tag = 'scoped memory for tpu_custom_call.1']
    %8 = vsyncpa [#allocation3], 0
    // Predicated region
    $region2: #{tpu_custom_call.1} parent=1 // pred_check
      _
    $region3: #{tpu_custom_call.1} parent=1 // pred_check_branch
      %10 = sbr.rel (0) target = $region5
    $region4: #{tpu_custom_call.1} parent=1 // pred_region
      _
    $region5: #{tpu_custom_call.1} parent=1 // pred_fallthru
      _
    // Predicated region
    $region6: #{tpu_custom_call.1} parent=1 // pred_check
      _
    $region7: #{tpu_custom_call.1} parent=1 // pred_check_branch
      %12 = sbr.rel (0) target = $region9
    $region8: #{tpu_custom_call.1} parent=1 // pred_region
      _
    $region9: #{tpu_custom_call.1} parent=1 // pred_fallthru
      _
    // Predicated region
    $region10: #{tpu_custom_call.1} parent=1 // pred_check
      _
    $region11: #{tpu_custom_call.1} parent=1 // pred_check_branch
      %14 = sbr.rel (0) target = $region13
    $region12: #{tpu_custom_call.1} parent=1 // pred_region
      _
    $region13: #{tpu_custom_call.1} parent=1 // pred_fallthru
      _
    %v16 = vld [vmem:[%s0] sm:$0xf]
    %v17 = vpack.c.bf16 %v16, %v16
    %v18 = vld [vmem:[%s1] sm:$0xf]
    %v19 = vld [vmem:[%s1 + $0x4] sm:$0xf]
    %v20 = vld [vmem:[%s1 + $0x8] sm:$0xf]
    %v21 = vld [vmem:[%s1 + $0xc] sm:$0xf]
    %v22 = vld [vmem:[%s1 + $0x10] sm:$0xf]
    %v23 = vld [vmem:[%s1 + $0x14] sm:$0xf]
    %v24 = vld [vmem:[%s1 + $0x18] sm:$0xf]
    %v25 = vld [vmem:[%s1 + $0x1c] sm:$0xf]
    %v26 = vld [vmem:[%s2] sm:$0x1]
    %v28 = vlaneseq
    %v29 = vshrl.u32 %v28, 7
    %v30 = vsub.s32 0, %v29
    %v31 = vrot.slane %v26, %v30
    %v41 = vunpack.c.l.b16 %v18
    %v42 = vunpack.c.l.b16 %v19
    %v43 = vunpack.c.l.b16 %v20
    %v44 = vunpack.c.l.b16 %v21
    %v45 = vunpack.c.l.b16 %v22
    %v46 = vunpack.c.l.b16 %v23
    %v47 = vunpack.c.l.b16 %v24
    %v48 = vunpack.c.l.b16 %v25
    %v49 = vpack.c.b16 %v42, %v41
    %v50 = vpack.c.b16 %v44, %v43
    %v51 = vpack.c.b16 %v46, %v45
    %v52 = vpack.c.b16 %v48, %v47
    %vm57 = vcmask 523264
    %v59 = vsel %vm57, %v17, 0
    %61 = vmatprep.subr.bf16.mxu0 0
    %62 = vmatpush1.bf16.msra.mxu0 %v49
    %63 = vmatprep.subr.bf16.mxu0 0
    %64 = vmatpush1.bf16.msra.mxu0 %v50
    %65 = vmatprep.subr.bf16.mxu0 0
    %66 = vmatpush1.bf16.msra.mxu0 %v51
    %67 = vmatprep.subr.bf16.mxu0 0
    %68 = vmatpush1.bf16.msra.mxu0 %v52
    %69 = vmatprep.subr.bf16.mxu0 0
    %70 = vmatpush1.bf16.msra.mxu0 0
    %71 = vmatprep.subr.bf16.mxu0 0
    %72 = vmatpush1.bf16.msra.mxu0 0
    %73 = vmatprep.subr.bf16.mxu0 0
    %74 = vmatpush1.bf16.msra.mxu0 0
    %75 = vmatprep.subr.bf16.mxu0 0
    %76 = vmatpush1.bf16.msra.mxu0 0
    %77 = vmatprep.subr.bf16.mxu0 0
    %78 = vmatpush1.bf16.msra.mxu0 0
    %79 = vmatprep.subr.bf16.mxu0 0
    %80 = vmatpush1.bf16.msra.mxu0 0
    %81 = vmatprep.subr.bf16.mxu0 0
    %82 = vmatpush1.bf16.msra.mxu0 0
    %83 = vmatprep.subr.bf16.mxu0 0
    %84 = vmatpush1.bf16.msra.mxu0 0
    %85 = vmatprep.subr.bf16.mxu0 0
    %86 = vmatpush1.bf16.msra.mxu0 0
    %87 = vmatprep.subr.bf16.mxu0 0
    %88 = vmatpush1.bf16.msra.mxu0 0
    %89 = vmatprep.subr.bf16.mxu0 0
    %90 = vmatpush1.bf16.msra.mxu0 0
    %91 = vmatprep.subr.bf16.mxu0 0
    %92 = vmatpush1.bf16.msra.mxu0 0
    %93 = vmatprep.mubr.bf16.mxu0 0
    %94 = vmatmul.mubr.bf16.gmra.mrb[0].mxu0 %v59
    %v95 = vpop.f32.mrb[0].mxu0
    %v96 = vadd.f32 %v31, %v95
    %v97 = vpop.f32.mrb[0].mxu0
    %v98 = vpop.f32.mrb[0].mxu0
    %v99 = vpop.f32.mrb[0].mxu0
    %100 = vdwg.mxu0
    %vm101 = vcmask 257024
    %102 = vst.msk [vmem:[#allocation2] sm:$0xf] %vm101, %v96
    // Predicated region
    $region14: #{tpu_custom_call.1} parent=1 // pred_check
      _
    $region15: #{tpu_custom_call.1} parent=1 // pred_check_branch
      %104 = sbr.rel (0) target = $region17
    $region16: #{tpu_custom_call.1} parent=1 // pred_region
      %s106 = ssub.s32 64, 64
      %107 = vsyncadd [#allocation3], %s106
      %s109 = sshll.u32 [#allocation2], 4
      %s110 = int_to_ptr.vmem [resolvable:$true] %s109
      %112 = dma.vmem_to_hbm [thread:$0]  %s110, 64, %s3, [#allocation3]
    $region17: #{tpu_custom_call.1} parent=1 // pred_fallthru
      _
    // Predicated region
    $region18: #{tpu_custom_call.1} parent=1 // pred_check
      _
    $region19: #{tpu_custom_call.1} parent=1 // pred_check_branch
      %114 = sbr.rel (0) target = $region21
    $region20: #{tpu_custom_call.1} parent=1 // pred_region
      %115 = dma.done [#allocation3], 64
    $region21: #{tpu_custom_call.1} parent=1 // pred_fallthru
      _
    %116 = vsyncpa [#allocation3], 1

</llo_original>
